<compile_context>
chip_gen: v5e
topology: v5e:2x2
jax: 0.10.0
libtpu: 0.0.40
codegen_flags: <defaults>
</compile_context>

<pallas_src>
import functools

import jax
import jax.numpy as jnp
from jax import lax
from jax.experimental import pallas as pl
from jax.experimental.pallas import tpu as pltpu


WEIGHT_DICE = 1.0
WEIGHT_CE = 1.0
WEIGHT_CLDICE = 1.0

DICE_SMOOTH = 1.0
REGION_RATIO = 2.0      # region_weight_ratio (dice / CE / cldice)
CLASS_RATIO = 2.0       # class_weight_ratio  (dice / CE / cldice)
CLDICE_THRESH = 4       # thresh_width
CLDICE_KSIZE = 3        # kernel_size
CLDICE_PAD = 1          # padding

# Tiling / compiler knobs (sized for v7x's 64 MiB VMEM; v5e/v6e have more headroom).
STATS_N_TILE_TARGET = 32768          # voxels per N-tile in the stats kernel
VMEM_LIMIT_BYTES = 64 * 1024 * 1024  # explicit scoped-VMEM limit on every pallas_call


# =============================================================================
# pltpu.roll direction probe (run once, outside jit): keeps the skeleton kernel's
# boundary masks correct regardless of the rotate convention of the lowering.
# True  <=> pltpu.roll matches jnp.roll (result[i] = x[i - shift]).
# =============================================================================
_ROLL_NUMPY_CONVENTION = None


def _roll_is_numpy():
    global _ROLL_NUMPY_CONVENTION
    if _ROLL_NUMPY_CONVENTION is None:
        def k(x_ref, o_ref):
            o_ref[...] = pltpu.roll(x_ref[...], 1, axis=1)

        x = jnp.broadcast_to(jnp.arange(128, dtype=jnp.float32)[None, :], (8, 128))
        y = pl.pallas_call(k, out_shape=jax.ShapeDtypeStruct((8, 128), jnp.float32))(x)
        _ROLL_NUMPY_CONVENTION = bool(float(y[0, 1]) == 0.0)
    return _ROLL_NUMPY_CONVENTION


def _pick_n_tile(n, target=STATS_N_TILE_TARGET):
    """Largest multiple of 128 that divides n and is <= target (else n itself)."""
    if n <= target or n % 128 != 0:
        return n
    for t in range(target - target % 128, 127, -128):
        if n % t == 0:
            return t
    return n


# =============================================================================
# Kernel 1: softmax + SoftDice / weighted-CE statistics, tiled over N.
# Accumulates unnormalized weighted sums per batch; normalization, the fp/fn
# identities and the batch_dice reduction happen in plain JAX afterwards.
# =============================================================================
def _stats_kernel(logits_ref, label_ref, cl_ref,
                  probs_fg_ref, tp_ref, pw_ref, ow_ref, wd_ref, ce_ref, wce_ref,
                  *, num_classes, region_ratio, class_ratio):
    n_idx = pl.program_id(1)

    logits = logits_ref[0]                       # (C, TN) raw logits
    lab = label_ref[0]                           # (1, TN) float labels (integer valued)
    cl = cl_ref[0]                               # (1, TN) centerline region weight

    # --- softmax over the channel axis (softmax_helper); single reciprocal per row ---
    m = jnp.max(logits, axis=0, keepdims=True)                       # (1, TN)
    e = jnp.exp(logits - m)
    denom = jnp.sum(e, axis=0, keepdims=True)                        # (1, TN)
    probs = e * pl.reciprocal(denom, approx=False)                   # (C, TN)
    probs_fg_ref[0] = probs[1:]        # only foreground probs are used downstream

    # one-hot of long(label) over the channel axis (scatter_(1, gt.long(), 1));
    # labels must be small integers exactly representable in f32.
    lab_i = jnp.floor(lab)
    cid = lax.broadcasted_iota(jnp.float32, (num_classes, logits.shape[-1]), 0)
    onehot = (cid == lab_i).astype(jnp.float32)                      # (C, TN)

    # --- SoftDiceLoss weight (UNNORMALIZED; w/sum(w) is separable) ---
    region_w = jnp.where(cl > 0.5, region_ratio, 1.0)                # (1, TN)
    tbin = jnp.where(lab > 0.5, 1.0, lab)
    w1 = tbin * class_ratio
    w_d = region_w + w1 + jnp.where(w1 == 0.0, 1.0, w1)              # (1, TN)

    pon = probs * onehot
    tp_t = jnp.sum(pon * w_d, axis=1, keepdims=True)                 # (C, 1)
    pw_t = jnp.sum(probs * w_d, axis=1, keepdims=True)               # (C, 1)  -> fp = pw - tp
    ow_t = jnp.sum(onehot * w_d, axis=1, keepdims=True)              # (C, 1)  -> fn = ow - tp
    wd_t = jnp.sum(w_d, axis=1, keepdims=True)                       # (1, 1)

    # --- RegionCrossEntropyLoss: -log_softmax at the true class ---
    logit_true = jnp.sum(onehot * logits, axis=0, keepdims=True)     # (1, TN)
    ce_vox = (m + jnp.log(denom)) - logit_true                       # (1, TN)
    w_ce = jnp.where(lab_i > 0.5, class_ratio, 1.0) + region_w       # (1, TN)
    ce_t = jnp.sum(ce_vox * w_ce, axis=1, keepdims=True)             # (1, 1)
    wce_t = jnp.sum(w_ce, axis=1, keepdims=True)                     # (1, 1)

    @pl.when(n_idx == 0)
    def _():
        tp_ref[...] = jnp.zeros_like(tp_ref)
        pw_ref[...] = jnp.zeros_like(pw_ref)
        ow_ref[...] = jnp.zeros_like(ow_ref)
        wd_ref[...] = jnp.zeros_like(wd_ref)
        ce_ref[...] = jnp.zeros_like(ce_ref)
        wce_ref[...] = jnp.zeros_like(wce_ref)

    tp_ref[0] += tp_t
    pw_ref[0] += pw_t
    ow_ref[0] += ow_t
    wd_ref[0] += wd_t
    ce_ref[0] += ce_t
    wce_ref[0] += wce_t


def _stats_pallas(logits_flat, label_flat, cl_flat):
    B, C, N = logits_flat.shape
    Cm = C - 1
    TN = _pick_n_tile(N)
    NT = N // TN
    kern = functools.partial(_stats_kernel, num_classes=C,
                             region_ratio=REGION_RATIO, class_ratio=CLASS_RATIO)
    out_shape = (
        jax.ShapeDtypeStruct((B, Cm, N), jnp.float32),   # foreground softmax probs
        jax.ShapeDtypeStruct((B, C, 1), jnp.float32),    # sum probs*onehot*w   (tp)
        jax.ShapeDtypeStruct((B, C, 1), jnp.float32),    # sum probs*w
        jax.ShapeDtypeStruct((B, C, 1), jnp.float32),    # sum onehot*w
        jax.ShapeDtypeStruct((B, 1, 1), jnp.float32),    # sum w        (dice weights)
        jax.ShapeDtypeStruct((B, 1, 1), jnp.float32),    # sum ce_vox*w_ce
        jax.ShapeDtypeStruct((B, 1, 1), jnp.float32),    # sum w_ce
    )
    grid_spec = pltpu.PrefetchScalarGridSpec(
        num_scalar_prefetch=0, grid=(B, NT),
        in_specs=[pl.BlockSpec((1, C, TN), lambda b, n: (b, 0, n)),
                  pl.BlockSpec((1, 1, TN), lambda b, n: (b, 0, n)),
                  pl.BlockSpec((1, 1, TN), lambda b, n: (b, 0, n))],
        out_specs=(pl.BlockSpec((1, Cm, TN), lambda b, n: (b, 0, n)),
                   pl.BlockSpec((1, C, 1), lambda b, n: (b, 0, 0)),
                   pl.BlockSpec((1, C, 1), lambda b, n: (b, 0, 0)),
                   pl.BlockSpec((1, C, 1), lambda b, n: (b, 0, 0)),
                   pl.BlockSpec((1, 1, 1), lambda b, n: (b, 0, 0)),
                   pl.BlockSpec((1, 1, 1), lambda b, n: (b, 0, 0)),
                   pl.BlockSpec((1, 1, 1), lambda b, n: (b, 0, 0))))
    return pl.pallas_call(
        kern, out_shape=out_shape, grid_spec=grid_spec,
        compiler_params=pltpu.CompilerParams(
            dimension_semantics=("parallel", "arbitrary"),
            vmem_limit_bytes=VMEM_LIMIT_BYTES),
    )(logits_flat, label_flat, cl_flat)


# =============================================================================
# Kernel 2: 3D soft-skeletonization (iterated stride-1 max-pool3d) fused with the
# cldice weighted normalized-intersection reductions.  Grid = (B, C-1); the volume
# block is (D, H*W) so the lane axis stays 128-dense even for small W.
# TODO(synk): halo-tile along D for very large volumes on v7x (64 MiB VMEM).
# =============================================================================
def _skel_reduce_kernel(probs_ref, cl_ref,
                        inter_i_ref, clsum_i_ref, inter_t_ref, wsum_ref,
                        *, H, W, pad, thresh_width, region_ratio, class_ratio,
                        roll_numpy):
    x0 = probs_ref[0, 0]                        # (D, H*W) fg softmax probabilities
    cl = cl_ref[0]                              # (D, H*W) centerline region weight
    D, HW = x0.shape

    # Edge masks (loop-invariant, computed once per grid step).
    lane = lax.broadcasted_iota(jnp.int32, (D, HW), 1)
    w_pos = lane % W
    h_pos = lane // W
    mw_hi = w_pos < (W - 1)
    mw_lo = w_pos > 0
    mh_hi = h_pos < (H - 1)
    mh_lo = h_pos > 0

    def lane_nbrs(v, s):
        """Return (element at +s, element at -s) along the lane axis (cyclic)."""
        if roll_numpy:
            return pltpu.roll(v, HW - s, axis=1), pltpu.roll(v, s, axis=1)
        return pltpu.roll(v, s, axis=1), pltpu.roll(v, HW - s, axis=1)

    def maxpool3d(v):
        # kernel_size = 2*pad+1, stride 1, implicit -inf padding (PyTorch max_pool3d),
        # realized as `pad` repeats of a 3-wide edge-clamped pool per axis
        # (edge clamping is equivalent to -inf padding for max pooling).
        for _ in range(pad):
            hi, lo = lane_nbrs(v, 1)                                    # W axis
            v = jnp.maximum(v, jnp.maximum(jnp.where(mw_hi, hi, v),
                                           jnp.where(mw_lo, lo, v)))
            hi, lo = lane_nbrs(v, W)                                    # H axis
            v = jnp.maximum(v, jnp.maximum(jnp.where(mh_hi, hi, v),
                                           jnp.where(mh_lo, lo, v)))
            up = jnp.concatenate([v[:1], v[:-1]], axis=0)               # D axis (sublane)
            dn = jnp.concatenate([v[1:], v[-1:]], axis=0)
            v = jnp.maximum(v, jnp.maximum(up, dn))
        return v

    def body(_, x):
        min_pool_x = -maxpool3d(-x)
        contour = jnp.maximum(maxpool3d(min_pool_x) - min_pool_x, 0.0)
        return jnp.maximum(x - contour, 0.0)

    skel = lax.fori_loop(0, thresh_width, body, x0)

    # cldice reductions.  The target one-hot is the constant "1 on fg channel 0
    # (original channel 1), 0 elsewhere" and its soft skeleton equals itself, so it
    # is generated from the grid index instead of being read from HBM.
    is_ch0 = jnp.where(pl.program_id(1) == 0, 1.0, 0.0).astype(jnp.float32)
    w = jnp.where(cl > 0.5, region_ratio, 1.0) + is_ch0 * class_ratio   # unnormalized

    def sum_all(a):                       # (D, HW) -> (1, 1)
        return jnp.sum(jnp.sum(a, axis=1, keepdims=True), axis=0, keepdims=True)

    inter_i_ref[0, 0] = is_ch0 * sum_all(skel * w)     # sum(out_skel * onehot * w)
    clsum_i_ref[0, 0] = sum_all(skel)                  # sum(out_skel)
    inter_t_ref[0, 0] = is_ch0 * sum_all(x0 * w)       # sum(tgt_skel * probs * w)
    wsum_ref[0, 0] = sum_all(w)                        # per-(b,c) weight sum


def _skel_reduce_pallas(probs_fg, cl_vol, H, W, roll_numpy):
    assert CLDICE_KSIZE == 2 * CLDICE_PAD + 1  # "same" spatial shape, as in the module
    B, Cm, D, HW = probs_fg.shape
    kern = functools.partial(
        _skel_reduce_kernel, H=H, W=W, pad=CLDICE_PAD, thresh_width=CLDICE_THRESH,
        region_ratio=REGION_RATIO, class_ratio=CLASS_RATIO, roll_numpy=roll_numpy)
    out_shape = tuple(jax.ShapeDtypeStruct((B, Cm, 1, 1), jnp.float32)
                      for _ in range(4))
    grid_spec = pltpu.PrefetchScalarGridSpec(
        num_scalar_prefetch=0, grid=(B, Cm),
        in_specs=[pl.BlockSpec((1, 1, D, HW), lambda b, c: (b, c, 0, 0)),
                  pl.BlockSpec((1, D, HW), lambda b, c: (b, 0, 0))],
        out_specs=tuple(pl.BlockSpec((1, 1, 1, 1), lambda b, c: (b, c, 0, 0))
                        for _ in range(4)))
    return pl.pallas_call(
        kern, out_shape=out_shape, grid_spec=grid_spec,
        compiler_params=pltpu.CompilerParams(
            dimension_semantics=("parallel", "parallel"),
            vmem_limit_bytes=VMEM_LIMIT_BYTES),
    )(probs_fg, cl_vol)


# =============================================================================
# Full forward pass (glue in plain JAX, hot paths in the Pallas kernels above)
# =============================================================================
@functools.partial(jax.jit, static_argnames=("roll_numpy",))
def _loss_impl(net_output, target, *, roll_numpy):
    B, C, D, H, W = net_output.shape
    assert C >= 2, "need background + at least one foreground class"
    N = D * H * W
    HW = H * W
    Cm = C - 1

    # target.shape[1] != 1 branch of the module's forward.
    # lung_mask = target[:, :1]  (unused: lung_mask_dice / _CE / _cldice are False)
    centerline = target[:, 1:2]
    label = target[:, -1:]

    logits_flat = net_output.reshape(B, C, N).astype(jnp.float32)
    label_flat = label.reshape(B, 1, N).astype(jnp.float32)
    cl_flat = centerline.reshape(B, 1, N).astype(jnp.float32)

    (probs_fg_flat, tp_b, pw_b, ow_b, wd_b, ce_b, wce_b) = _stats_pallas(
        logits_flat, label_flat, cl_flat)

    # ---- SoftDiceLoss (batch_dice=True, do_bg=False; separable weight norm) ----
    wd = wd_b[:, 0, 0]                                               # (B,)
    tp = jnp.sum(tp_b[:, :, 0] / wd[:, None], axis=0)                # (C,)
    fp = jnp.sum((pw_b - tp_b)[:, :, 0] / wd[:, None], axis=0)       # probs*(1-onehot)
    fn = jnp.sum((ow_b - tp_b)[:, :, 0] / wd[:, None], axis=0)       # (1-probs)*onehot
    nominator = 2.0 * tp + DICE_SMOOTH
    denominator = 2.0 * tp + fp + fn + DICE_SMOOTH
    dc = nominator / (denominator + 1e-8)
    dc_loss = -jnp.mean(dc[1:])

    # ---- RegionCrossEntropyLoss (mean over all B*N voxels) ----
    ce_loss = jnp.sum(ce_b[:, 0, 0] / wce_b[:, 0, 0]) / (B * N)

    # ---- soft_cldice_loss ----
    # apply_nonlin(target) softmaxes a single channel -> all ones -> one-hot puts
    # every voxel in class 1; after do_bg slicing the target one-hot equals its own
    # soft skeleton and is handled analytically (no constant skeleton / HBM traffic).
    probs_fg = probs_fg_flat.reshape(B, Cm, D, HW)
    cl_vol = cl_flat.reshape(B, D, HW)
    inter_i, clsum_i, inter_t, wsum = _skel_reduce_pallas(
        probs_fg, cl_vol, H, W, roll_numpy)

    wsum_b = jnp.sum(wsum[:, :, 0, 0], axis=1)                       # (B,)
    iflat = (inter_i[:, :, 0, 0] / wsum_b[:, None] + 1.0) / (clsum_i[:, :, 0, 0] + 1.0)
    clsum_t = jnp.where(jnp.arange(Cm) == 0, jnp.float32(N), 0.0)[None, :]
    tflat = (inter_t[:, :, 0, 0] / wsum_b[:, None] + 1.0) / (clsum_t + 1.0)
    intersection = jnp.sum(iflat * tflat, axis=0)                    # batch_dice=True
    cldc_loss = -jnp.mean(2.0 * intersection /
                          (jnp.sum(iflat, axis=0) + jnp.sum(tflat, axis=0)))

    # aggregate == 'sum'
    return WEIGHT_CE * ce_loss + WEIGHT_DICE * dc_loss + WEIGHT_CLDICE * cldc_loss


def soft_cldice_dc_ce_centerline_loss(net_output, target):
    """net_output: (B, C, D, H, W) logits; target: (B, 3, D, H, W) with
    channels = [lung_mask, centerline, label]."""
    return _loss_impl(net_output, target, roll_numpy=_roll_is_numpy())


# =============================================================================
# Pure-JAX reference (for a correctness sanity check only)
# =============================================================================
def _maxpool3d_ref(x, k, p):
    return lax.reduce_window(
        x, -jnp.inf, lax.max,
        window_dimensions=(1, 1, k, k, k),
        window_strides=(1, 1, 1, 1, 1),
        padding=((0, 0), (0, 0), (p, p), (p, p), (p, p)))


def _reference_loss(net_output, target):
    B, C, D, H, W = net_output.shape
    N = D * H * W
    centerline = target[:, 1:2]
    label = target[:, -1:]

    probs = jax.nn.softmax(net_output, axis=1)
    onehot = (jnp.arange(C, dtype=jnp.float32)[None, :, None, None, None]
              == jnp.floor(label)).astype(jnp.float32)

    # SoftDiceLoss
    tbin = jnp.where(label > 0.5, 1.0, label)
    w = jnp.where(centerline > 0.5, REGION_RATIO, 1.0) + tbin * CLASS_RATIO
    w1 = tbin * CLASS_RATIO
    w1 = jnp.where(w1 == 0.0, 1.0, w1)
    w = w + w1
    w = w / jnp.sum(w.reshape(B, -1), axis=1).reshape(B, 1, 1, 1, 1)
    tp = jnp.sum(probs * onehot * w, axis=(0, 2, 3, 4))
    fp = jnp.sum(probs * (1 - onehot) * w, axis=(0, 2, 3, 4))
    fn = jnp.sum((1 - probs) * onehot * w, axis=(0, 2, 3, 4))
    dc = (2 * tp + DICE_SMOOTH) / (2 * tp + fp + fn + DICE_SMOOTH + 1e-8)
    dc_loss = -jnp.mean(dc[1:])

    # RegionCrossEntropyLoss
    logp = jax.nn.log_softmax(net_output, axis=1)
    ce_vox = -jnp.sum(onehot * logp, axis=1)
    lab_i = jnp.floor(label[:, 0])
    wce = (jnp.where(lab_i > 0.5, CLASS_RATIO, 1.0)
           + jnp.where(centerline[:, 0] > 0.5, REGION_RATIO, 1.0))
    wce = wce / jnp.sum(wce.reshape(B, -1), axis=1).reshape(B, 1, 1, 1)
    ce_loss = jnp.mean(ce_vox * wce)

    # soft_cldice_loss
    probs_fg = probs[:, 1:]
    onehot_fg = jnp.broadcast_to(
        (jnp.arange(1, C) == 1).astype(jnp.float32)[None, :, None, None, None],
        (B, C - 1, D, H, W))

    def skel(x):
        for _ in range(CLDICE_THRESH):
            minp = -_maxpool3d_ref(-x, CLDICE_KSIZE, CLDICE_PAD)
            contour = jnp.maximum(_maxpool3d_ref(minp, CLDICE_KSIZE, CLDICE_PAD) - minp, 0.0)
            x = jnp.maximum(x - contour, 0.0)
        return x

    out_skel, tgt_skel = skel(probs_fg), skel(onehot_fg)
    cl_flat = centerline.reshape(B, 1, N)

    def norm_inter(clf, vf, which):
        clf = clf.reshape(B, C - 1, N)
        vf = vf.reshape(B, C - 1, N)
        base = vf if which == 1 else clf
        cw = jnp.where(base > 0.5, 1.0, base)
        wgt = jnp.where(cl_flat > 0.5, REGION_RATIO, 1.0) + cw * CLASS_RATIO
        wgt = wgt / jnp.sum(wgt.reshape(B, -1), axis=1).reshape(B, 1, 1)
        inter = jnp.sum(clf * vf * wgt, axis=-1)
        return (inter + 1.0) / (jnp.sum(clf, axis=-1) + 1.0)

    iflat = norm_inter(out_skel, onehot_fg, 1)
    tflat = norm_inter(tgt_skel, probs_fg, 0)
    intersection = jnp.sum(iflat * tflat, axis=0)
    cldc_loss = -jnp.mean(2.0 * intersection / (jnp.sum(iflat, 0) + jnp.sum(tflat, 0)))

    return WEIGHT_CE * ce_loss + WEIGHT_DICE * dc_loss + WEIGHT_CLDICE * cldc_loss


if __name__ == "__main__":
    # Small shapes, but chosen so the N-tiled stats path (N // 32768 = 2 tiles) and the
    # lane-dense (D, H*W) skeleton layout (H*W multiple of 128) are both exercised.
    B, C, D, H, W = 2, 2, 8, 64, 128
    key = jax.random.PRNGKey(0)
    k1, k2, k3, k4 = jax.random.split(key, 4)
    net_output = jax.random.normal(k1, (B, C, D, H, W), dtype=jnp.float32)
    label = jax.random.randint(k2, (B, 1, D, H, W), 0, C).astype(jnp.float32)
    centerline = jax.random.bernoulli(k3, 0.2, (B, 1, D, H, W)).astype(jnp.float32)
    lung_mask = jax.random.bernoulli(k4, 0.7, (B, 1, D, H, W)).astype(jnp.float32)
    target = jnp.concatenate([lung_mask, centerline, label], axis=1)   # (B, 3, D, H, W)

    loss = jax.block_until_ready(soft_cldice_dc_ce_centerline_loss(net_output, target))
    ref = jax.block_until_ready(_reference_loss(net_output, target))

    assert bool(jnp.isfinite(loss)), loss
    assert abs(float(loss) - float(ref)) < 1e-3 * max(1.0, abs(float(ref))), (loss, ref)
    print("KERNEL_OK")
</pallas_src>

<mosaic_0001>
module attributes {stable_mosaic.version = 11 : i64} {
  func.func @k(%arg0: memref<8x128xf32, #tpu.memory_space<vmem>>, %arg1: memref<8x128xf32, #tpu.memory_space<vmem>>) attributes {dimension_semantics = [], scalar_prefetch = 0 : i64, scratch_operands = 0 : i64, tpu.core_type = #tpu.core_type<tc>} {
    %c0 = arith.constant 0 : index
    %c0_0 = arith.constant 0 : index
    %0 = vector.load %arg0[%c0, %c0_0] : memref<8x128xf32, #tpu.memory_space<vmem>>, vector<8x128xf32>
    %c1_i32 = arith.constant 1 : i32
    %1 = tpu.dynamic_rotate %0 by %c1_i32 dim 1 : vector<8x128xf32>, i32 -> vector<8x128xf32>
    %c0_1 = arith.constant 0 : index
    %c0_2 = arith.constant 0 : index
    %2 = vector.load %arg1[%c0_1, %c0_2] : memref<8x128xf32, #tpu.memory_space<vmem>>, vector<8x128xf32>
    tpu.vector_store %arg1[%c0_1, %c0_2], %1 {strides = array<i32>} : memref<8x128xf32, #tpu.memory_space<vmem>>, vector<8x128xf32>,
    return
  }
}

</mosaic_0001>

<llo_original>
// kernel: tpu_custom_call.1
$region0: #{tpu_custom_call.1}
  #allocation0 [shape = 'u32[]', space=smem, size = 0x4, offset = 0x4, fixed_abs, tag = 'smem constant byte address 0x4 - core index']
  #allocation1 [shape = 'u32[72,128]{1,0:T(1,128)}', space=vmem, size = 0x9000, scoped, tag = 'internal scratch']
  %s0 = inlined_call_operand.hbm [shape: f32[8,128], index: 0, kind: input, shape index: {}]
  %s1 = inlined_call_operand.hbm [shape: f32[8,128], index: 1, kind: output, shape index: {}]
  %s2 = sld [smem:[#allocation0]]
  $region18: #{tpu_custom_call.1} parent=0
    _
  %s4 = ssub.s32 1, %s2
  %s5 = scalar_select 0, %s4, %s2
  $region1: #{tpu_custom_call.1} parent=0
    #allocation2 [shape = 'u8[4096]{0}', space=vmem, size = 0x1000, scoped, tag = 'input window, operand 0, single buffered']
    #allocation3 [shape = 's32[1]{0}', space=sflag, size = 0x4, scoped, tag = 'scoped memory for tpu_custom_call.1']
    #allocation4 [shape = 's32[1]{0}', space=sflag, size = 0x4, scoped, tag = 'scoped memory for tpu_custom_call.1']
    #allocation5 [shape = 'u8[4096]{0}', space=vmem, size = 0x1000, scoped, tag = 'output window, operand 0, single buffered']
    %6 = vsyncpa [#allocation3], 0
    %7 = vsyncpa [#allocation4], 0
    // Predicated region
    $region2: #{tpu_custom_call.1} parent=1 // pred_check
      _
    $region3: #{tpu_custom_call.1} parent=1 // pred_check_branch
      %9 = sbr.rel (0) target = $region5
    $region4: #{tpu_custom_call.1} parent=1 // pred_region
      %11 = vsyncadd [#allocation3], 0
      %s13 = sshll.u32 %s0, 4
      %s14 = int_to_ptr.hbm [resolvable:$true] %s13
      %s15 = sshll.u32 [#allocation2], 4
      %s16 = int_to_ptr.vmem [resolvable:$true] %s15
      %18 = dma.hbm_to_vmem [thread:$0]  %s14, 128, %s16, [#allocation3]
    $region5: #{tpu_custom_call.1} parent=1 // pred_fallthru
      _
    // Predicated region
    $region6: #{tpu_custom_call.1} parent=1 // pred_check
      _
    $region7: #{tpu_custom_call.1} parent=1 // pred_check_branch
      %20 = sbr.rel (0) target = $region9
    $region8: #{tpu_custom_call.1} parent=1 // pred_region
      %22 = dma.done [#allocation3], 128
    $region9: #{tpu_custom_call.1} parent=1 // pred_fallthru
      _
    %v23 = vld [vmem:[#allocation2] sm:$0xff]
    %24 = vrot.lane.b32.xlu0 %v23, 1
    %v25 = vpop.permute.xlu0 %24
    %26 = vst [vmem:[#allocation5] sm:$0xff] %v25
    // Predicated region
    $region10: #{tpu_custom_call.1} parent=1 // pred_check
      _
    $region11: #{tpu_custom_call.1} parent=1 // pred_check_branch
      %28 = sbr.rel (0) target = $region13
    $region12: #{tpu_custom_call.1} parent=1 // pred_region
      %30 = vsyncadd [#allocation4], 0
      %s32 = sshll.u32 [#allocation5], 4
      %s33 = int_to_ptr.vmem [resolvable:$true] %s32
      %s34 = sshll.u32 %s1, 4
      %s35 = int_to_ptr.hbm [resolvable:$true] %s34
      %37 = dma.vmem_to_hbm [thread:$0]  %s33, 128, %s35, [#allocation4]
    $region13: #{tpu_custom_call.1} parent=1 // pred_fallthru
      _
    // Predicated region
    $region14: #{tpu_custom_call.1} parent=1 // pred_check
      _
    $region15: #{tpu_custom_call.1} parent=1 // pred_check_branch
      %39 = sbr.rel (0) target = $region17
    $region16: #{tpu_custom_call.1} parent=1 // pred_region
      %41 = dma.done [#allocation4], 128
    $region17: #{tpu_custom_call.1} parent=1 // pred_fallthru
      _
    %42 = vsyncpa [#allocation3], 1
    %43 = vsyncpa [#allocation4], 1

</llo_original>
